<compile_context>
chip_gen: v7x
topology: tpu7x:2x2x1
jax: 0.10.0
libtpu: 0.0.40
codegen_flags: <defaults>
</compile_context>

<pallas_src>
import jax
import jax.numpy as jnp
from jax.experimental import pallas as pl
from jax.experimental.pallas import tpu as pltpu

N_FEAT = 148  # fixed by nn.Linear(148, 148) in the module

# Keep double-buffered working set under ~26 MiB: fits v7x (64 MiB physical,
# 32 MiB scoped default) with headroom, and v5e/v6e once vmem_limit_bytes is
# raised to 32 MiB below.
_VMEM_BUDGET_BYTES = 26 * 1024 * 1024
_VMEM_LIMIT_BYTES = 32 * 1024 * 1024


def heat_kernel(x0_ref, wt_ref, b_ref, t_ref, out_ref):
    """Linear projection + broadcast FMA epilogue, one (TB, TT, N) tile.

    x0_ref  : (TB, N)      phi_0[:, :, 0] batch tile (resident along T axis)
    wt_ref  : (N, N)       pre-transposed Linear weight (W^T), resident
    b_ref   : (1, N)       Linear bias, resident
    t_ref   : (TB, TT, 1)  time tile, T on sublanes (lane splat broadcast)
    out_ref : (TB, TT, N)  == predictions.transpose(1, 2) tile
    """
    x0 = x0_ref[...].astype(jnp.float32)                       # (TB, N)
    # Projection recomputed per tile: ~2*TB*148*148 FLOPs on an otherwise
    # idle MXU (kernel is HBM-store-bound). Doing so keeps both grid axes
    # order-independent ("parallel") for megacore.
    y = (
        jnp.dot(x0, wt_ref[...].astype(jnp.float32),
                preferred_element_type=jnp.float32)
        + b_ref[...].astype(jnp.float32)
    )                                                           # (TB, N)

    t = t_ref[...].astype(jnp.float32)                          # (TB, TT, 1)
    # out[b, ti, n] = y[b, n] * t[b, ti] + x0[b, n]
    out = t * y[:, None, :] + x0[:, None, :]                    # (TB, TT, N)
    out_ref[...] = out.astype(out_ref.dtype)


def _round_down_mult(x, m):
    return (x // m) * m


def _pick_tb(B, cap):
    """Batch tile: multiple of 8 (or full B when B<=8, which is always a
    legal block dim). When B is large enough, keep >=2 B-blocks so both v7x
    TensorCores get work on the B axis."""
    if B <= 8:
        return B
    tb = max(8, min(cap, _round_down_mult(B, 8)))
    if B >= 16:
        tb = min(tb, max(8, _round_down_mult((B + 1) // 2, 8)))
    return tb


def _pick_tt(T, cap):
    """Time tile: multiple of 8 (or full T when T<=8), capped."""
    if T <= 8:
        return T
    return max(8, min(cap, _round_down_mult(T, 8)))


def _vmem_bytes(TB, TT):
    """Padded-layout VMEM estimate for double-buffered blocks (f32)."""
    lane = lambda n: -(-n // 128) * 128
    sub = lambda n: -(-n // 8) * 8
    out_blk = TB * sub(TT) * lane(N_FEAT) * 4      # 148 lanes pad to 256
    t_blk = TB * sub(TT) * lane(1) * 4             # 1 lane pads to 128
    x0_blk = sub(TB) * lane(N_FEAT) * 4
    w_blk = sub(N_FEAT) * lane(N_FEAT) * 4
    b_blk = sub(1) * lane(N_FEAT) * 4
    return 2 * (out_blk + t_blk + x0_blk + w_blk + b_blk)


def heat_diffusion_forward(phi0, t, weight, bias, *, tb_cap=16, tt_cap=512):
    """phi0: [B, N, M] f32, t: [B, T] f32, weight: [N, N], bias: [N]
    -> [B, T, N] f32 (== predictions.transpose(1, 2))."""
    B, N, M = phi0.shape
    _, T = t.shape
    assert N == N_FEAT

    # Wrapper-side glue (trivial XLA ops, negligible vs. the output writeback):
    #   - mode-0 slice (TODO(synk): store phi0 as [B, M, N] upstream so this
    #     slice is a contiguous lane-dense slab instead of a strided gather)
    #   - weight transposed once so the kernel matmul needs no relayout
    #   - t reshaped so T sits on sublanes inside the kernel
    x0 = phi0[:, :, 0]                       # (B, N)
    w_t = jnp.transpose(weight)              # (N, N) == W^T
    b2 = bias.reshape(1, N)                  # (1, N)
    t3 = t[:, :, None]                       # (B, T, 1)

    TB = _pick_tb(B, tb_cap)
    TT = _pick_tt(T, tt_cap)
    # Shrink (T first, then B) until the double-buffered working set fits.
    while _vmem_bytes(TB, TT) > _VMEM_BUDGET_BYTES and TT > 8:
        TT = max(8, _round_down_mult(TT // 2, 8))
    while _vmem_bytes(TB, TT) > _VMEM_BUDGET_BYTES and TB > 8:
        TB = max(8, _round_down_mult(TB // 2, 8))

    # cdiv grid: ragged edge blocks are masked by Pallas (OOB reads are
    # padding, OOB writes are dropped) -> big-tile roofline for any B/T.
    grid = (pl.cdiv(B, TB), pl.cdiv(T, TT))

    return pl.pallas_call(
        heat_kernel,
        out_shape=jax.ShapeDtypeStruct((B, T, N), phi0.dtype),
        grid_spec=pltpu.PrefetchScalarGridSpec(
            num_scalar_prefetch=0,
            grid=grid,
            in_specs=[
                # constant along the T axis -> resident across T tiles
                pl.BlockSpec((TB, N), lambda i, j: (i, 0)),
                pl.BlockSpec((N, N), lambda i, j: (0, 0)),
                pl.BlockSpec((1, N), lambda i, j: (0, 0)),
                # tiled along both axes, T on sublanes
                pl.BlockSpec((TB, TT, 1), lambda i, j: (i, j, 0)),
            ],
            out_specs=pl.BlockSpec((TB, TT, N), lambda i, j: (i, j, 0)),
        ),
        compiler_params=pltpu.CompilerParams(
            # Both axes independent (projection recomputed per tile), so the
            # v7x megacore can shard whichever axis has >1 block.
            dimension_semantics=("parallel", "parallel"),
            # Raise scoped VMEM above v5e's 16 MiB default; still well within
            # v7x's 64 MiB physical per TensorCore.
            vmem_limit_bytes=_VMEM_LIMIT_BYTES,
        ),
    )(x0, w_t, b2, t3)


def reference_forward(phi0, t, weight, bias):
    """Pure-JAX reference mirroring the PyTorch module exactly."""
    x0 = phi0[:, :, 0]                                           # [B, N]
    proj = x0 @ weight.T + bias                                  # [B, N]
    preds = proj[:, :, None] * t[:, None, :] + phi0[:, :, 0:1]   # [B, N, T]
    return jnp.transpose(preds, (0, 2, 1))                       # [B, T, N]


if __name__ == "__main__":
    # Small shapes consistent with the module; T=13 deliberately does not
    # divide the time tile so the cdiv-grid edge-masking path is exercised.
    B, N, M, T = 2, N_FEAT, 4, 13

    key = jax.random.PRNGKey(0)
    k_phi, k_t, k_w, k_b = jax.random.split(key, 4)

    phi0 = jax.random.normal(k_phi, (B, N, M), dtype=jnp.float32)
    t = jax.random.normal(k_t, (B, T), dtype=jnp.float32)

    # Deterministic parameter init (synthetic; mimics nn.Linear uniform bound).
    bound = 1.0 / (N ** 0.5)
    weight = jax.random.uniform(k_w, (N, N), jnp.float32, -bound, bound)
    bias = jax.random.uniform(k_b, (N,), jnp.float32, -bound, bound)

    out = heat_diffusion_forward(phi0, t, weight, bias)
    out = jax.block_until_ready(out)

    ref = reference_forward(phi0, t, weight, bias)
    assert out.shape == (B, T, N), out.shape
    assert jnp.allclose(out, ref, atol=1e-4, rtol=1e-4), "mismatch vs reference"

    print("KERNEL_OK")
</pallas_src>

<mosaic_0001>
module attributes {stable_mosaic.version = 11 : i64} {
  func.func @heat_kernel(%arg0: i32, %arg1: i32, %arg2: memref<2x148xf32, #tpu.memory_space<vmem>>, %arg3: memref<148x148xf32, #tpu.memory_space<vmem>>, %arg4: memref<1x148xf32, #tpu.memory_space<vmem>>, %arg5: memref<2x8x1xf32, #tpu.memory_space<vmem>>, %arg6: memref<2x8x148xf32, #tpu.memory_space<vmem>>) attributes {dimension_semantics = [#tpu.dimension_semantics<parallel>, #tpu.dimension_semantics<parallel>], iteration_bounds = array<i64: 1, 2>, scalar_prefetch = 0 : i64, scratch_operands = 0 : i64, tpu.core_type = #tpu.core_type<tc>, window_params = [{transform_indices = @transform_0, window_bounds = array<i64: 2, 148>}, {pipeline_mode = #tpu.pipeline_mode<synchronous>, transform_indices = @transform_1, window_bounds = array<i64: 148, 148>}, {pipeline_mode = #tpu.pipeline_mode<synchronous>, transform_indices = @transform_2, window_bounds = array<i64: 1, 148>}, {transform_indices = @transform_3, window_bounds = array<i64: 2, 8, 1>}, {transform_indices = @transform_4, window_bounds = array<i64: 2, 8, 148>}]} {
    %c0 = arith.constant 0 : index
    %c0_0 = arith.constant 0 : index
    %0 = vector.load %arg2[%c0, %c0_0] : memref<2x148xf32, #tpu.memory_space<vmem>>, vector<2x148xf32>
    %c0_1 = arith.constant 0 : index
    %c0_2 = arith.constant 0 : index
    %1 = vector.load %arg3[%c0_1, %c0_2] : memref<148x148xf32, #tpu.memory_space<vmem>>, vector<148x148xf32>
    %cst = arith.constant dense<0.000000e+00> : vector<2x148xf32>
    %2 = tpu.matmul %0, %1, %cst {dimension_numbers = #tpu.dot_dimension_numbers<[1], [0], [0], [1], [0, 0, 1, 1], [], []>} : vector<2x148xf32>, vector<148x148xf32>, vector<2x148xf32> -> vector<2x148xf32>
    %c0_3 = arith.constant 0 : index
    %c0_4 = arith.constant 0 : index
    %3 = vector.load %arg4[%c0_3, %c0_4] : memref<1x148xf32, #tpu.memory_space<vmem>>, vector<1x148xf32>
    %4 = vector.broadcast %3 : vector<1x148xf32> to vector<2x148xf32>
    %5 = arith.addf %2, %4 : vector<2x148xf32>
    %c0_5 = arith.constant 0 : index
    %c0_6 = arith.constant 0 : index
    %c0_7 = arith.constant 0 : index
    %6 = vector.load %arg5[%c0_5, %c0_6, %c0_7] : memref<2x8x1xf32, #tpu.memory_space<vmem>>, vector<2x8x1xf32>
    %7 = vector.shape_cast %5 : vector<2x148xf32> to vector<2x1x148xf32>
    %8 = vector.broadcast %6 : vector<2x8x1xf32> to vector<2x8x148xf32>
    %9 = vector.broadcast %7 : vector<2x1x148xf32> to vector<2x8x148xf32>
    %10 = arith.mulf %8, %9 : vector<2x8x148xf32>
    %11 = vector.shape_cast %0 : vector<2x148xf32> to vector<2x1x148xf32>
    %12 = vector.broadcast %11 : vector<2x1x148xf32> to vector<2x8x148xf32>
    %13 = arith.addf %10, %12 : vector<2x8x148xf32>
    %c0_8 = arith.constant 0 : index
    %c0_9 = arith.constant 0 : index
    %c0_10 = arith.constant 0 : index
    %14 = vector.load %arg6[%c0_8, %c0_9, %c0_10] : memref<2x8x148xf32, #tpu.memory_space<vmem>>, vector<2x8x148xf32>
    tpu.vector_store %arg6[%c0_8, %c0_9, %c0_10], %13 {strides = array<i32>} : memref<2x8x148xf32, #tpu.memory_space<vmem>>, vector<2x8x148xf32>,
    return
  }
  func.func @transform_0(%arg0: i32, %arg1: i32) -> (i32, i32) {
    %c0_i32 = arith.constant 0 : i32
    %c0_i32_0 = arith.constant 0 : i32
    return %arg0, %c0_i32 : i32, i32
  }
  func.func @transform_1(%arg0: i32, %arg1: i32) -> (i32, i32) {
    %c0_i32 = arith.constant 0 : i32
    %c0_i32_0 = arith.constant 0 : i32
    %c0_i32_1 = arith.constant 0 : i32
    return %c0_i32, %c0_i32_0 : i32, i32
  }
  func.func @transform_2(%arg0: i32, %arg1: i32) -> (i32, i32) {
    %c0_i32 = arith.constant 0 : i32
    %c0_i32_0 = arith.constant 0 : i32
    %c0_i32_1 = arith.constant 0 : i32
    return %c0_i32, %c0_i32_0 : i32, i32
  }
  func.func @transform_3(%arg0: i32, %arg1: i32) -> (i32, i32, i32) {
    %c0_i32 = arith.constant 0 : i32
    %c0_i32_0 = arith.constant 0 : i32
    return %arg0, %arg1, %c0_i32 : i32, i32, i32
  }
  func.func @transform_4(%arg0: i32, %arg1: i32) -> (i32, i32, i32) {
    %c0_i32 = arith.constant 0 : i32
    %c0_i32_0 = arith.constant 0 : i32
    return %arg0, %arg1, %c0_i32 : i32, i32, i32
  }
}

</mosaic_0001>

<llo_original>
// kernel: tpu_custom_call.1
$region0: #{tpu_custom_call.1}
  #allocation0 [shape = 'u32[]', space=smem, size = 0x4, offset = 0x4, fixed_abs, tag = 'smem constant byte address 0x4 - core index']
  #allocation1 [shape = 'u32[144,128]{1,0:T(1,128)}', space=vmem, size = 0x12000, scoped, tag = 'internal scratch']
  %s0 = inlined_call_operand.vmem [shape: f32[2,148], index: 0, kind: input, shape index: {}]
  %s1 = inlined_call_operand.hbm [shape: f32[148,148], index: 1, kind: input, shape index: {}]
  %s2 = inlined_call_operand.vmem [shape: f32[1,148], index: 2, kind: input, shape index: {}]
  %s3 = inlined_call_operand.vmem [shape: f32[2,13,1], index: 3, kind: input, shape index: {}]
  %s4 = inlined_call_operand.vmem [shape: f32[2,13,148], index: 4, kind: output, shape index: {}]
  %s5 = sld [smem:[#allocation0]]
  $region110: #{tpu_custom_call.1} parent=0
    _
  %s7 = ssub.s32 1, %s5
  %s8 = scalar_select 0, %s7, %s5
  $region1: #{tpu_custom_call.1} parent=0
    #allocation2 [shape = 'u8[155648]{0}', space=vmem, size = 0x26000, scoped, tag = 'input window, operand 1, single buffered']
    #allocation3 [shape = 's32[2]{0}', space=sflag, size = 0x8, scoped, tag = 'scoped memory for tpu_custom_call.1']
    #allocation4 [shape = 'u8[16384]{0}', space=vmem, size = 0x4000, scoped, tag = 'input window, operand 3']
    #allocation5 [shape = 'u8[32768]{0}', space=vmem, size = 0x8000, scoped, tag = 'output window, operand 0']
    %9 = vsyncpa [#allocation3], 0
    loop: start=0, step=1, limit=4
    $region2: #{tpu_custom_call.1} parent=1 // loop_pre_header
      _
    $region3: #{tpu_custom_call.1} parent=1 // loop_header
      %s11 = sphi 0, %s15
      %p12 = scmp.ge.s32.totalorder %s11, 4
      %s18 = sphi 0, %s30
      %s19 = sphi 0, %s26
      %s20 = sphi 0, %s18
      %s21 = sphi 0, %s19
      %s22 = sphi 0, %s20
      %s23 = sphi 0, %s21
      %s33 = sphi 0, %s35
      %s36 = sphi 0, %s33
      %s37 = sphi 0, %s36
      %s53 = sphi 0, %s37
      %s57 = sphi 0, %s57
      %s59 = sphi 0, %s57
      %s60 = sphi 0, %s59
      %s74 = sphi 0, %s60
      %s78 = sphi 0, %s78
      %s80 = sphi 0, %s78
      %s81 = sphi 0, %s80
      %s95 = sphi 0, %s81
      %s103 = sphi 0, %s105
      %s106 = sphi 0, %s103
      %s107 = sphi 0, %s106
      %s123 = sphi 0, %s107
      %s131 = sphi 0, %s133
      %s134 = sphi 0, %s131
      %s135 = sphi 0, %s134
      %s151 = sphi 0, %s135
    $region4: #{tpu_custom_call.1} parent=1 // loop_header_branch
      %14 = sbr.rel (%p12) target = $region8
    $region5: #{tpu_custom_call.1} parent=1 // loop_body
      %s16 = ssub.s32 %s11, 1
      %s17 = ssub.s32 %s11, 2
      %s24 = sadd.s32 1, %s19
      %p25 = scmp.ge.s32.totalorder %s24, 2
      %s26 = scalar_select %p25, 0, %s24
      %s27 = sadd.s32 1, %s18
      %s28 = scalar_select %p25, %s27, %s18
      %p29 = scmp.ge.s32.totalorder %s28, 1
      %s30 = scalar_select %p29, 0, %s28
      %s31 = ssub.s32 %s18, %s30
      %p32 = scmp.eq.s32.totalorder %s31, 0
      %s34 = sadd.s32 %s33, 1
      %s35 = scalar_select %p32, %s33, %s34
      %p38 = pneg %p32
      %p39 = scmp.eq.s32.totalorder %s11, 1
      %p40 = por %p38, %p39
      %p41 = scmp.ne.s32.totalorder %s33, %s36
      %p42 = scmp.eq.s32.totalorder %s11, 0
      %p43 = por %p41, %p42
      %p44 = scmp.ne.s32.totalorder %s33, %s36
      %p45 = scmp.eq.s32.totalorder %s16, 1
      %p46 = por %p44, %p45
      %p47 = scmp.ne.s32.totalorder %s36, %s37
      %p48 = scmp.eq.s32.totalorder %s16, 0
      %p49 = por %p47, %p48
      %p50 = scmp.ne.s32.totalorder %s36, %s37
      %p51 = scmp.eq.s32.totalorder %s17, 1
      %p52 = por %p50, %p51
      %p54 = scmp.ne.s32.totalorder %s37, %s53
      %p55 = scmp.eq.s32.totalorder %s17, 0
      %p56 = por %p54, %p55
      %s58 = sadd.s32 %s57, 1
      %p61 = scmp.eq.s32.totalorder %s11, 1
      %p62 = scmp.ne.s32.totalorder %s57, %s59
      %p63 = scmp.eq.s32.totalorder %s11, 0
      %p64 = por %p62, %p63
      %p65 = scmp.ne.s32.totalorder %s57, %s59
      %p66 = scmp.eq.s32.totalorder %s16, 1
      %p67 = por %p65, %p66
      %p68 = scmp.ne.s32.totalorder %s59, %s60
      %p69 = scmp.eq.s32.totalorder %s16, 0
      %p70 = por %p68, %p69
      %p71 = scmp.ne.s32.totalorder %s59, %s60
      %p72 = scmp.eq.s32.totalorder %s17, 1
      %p73 = por %p71, %p72
      %p75 = scmp.ne.s32.totalorder %s60, %s74
      %p76 = scmp.eq.s32.totalorder %s17, 0
      %p77 = por %p75, %p76
      %s79 = sadd.s32 %s78, 1
      %p82 = scmp.eq.s32.totalorder %s11, 1
      %p83 = scmp.ne.s32.totalorder %s78, %s80
      %p84 = scmp.eq.s32.totalorder %s11, 0
      %p85 = por %p83, %p84
      %p86 = scmp.ne.s32.totalorder %s78, %s80
      %p87 = scmp.eq.s32.totalorder %s16, 1
      %p88 = por %p86, %p87
      %p89 = scmp.ne.s32.totalorder %s80, %s81
      %p90 = scmp.eq.s32.totalorder %s16, 0
      %p91 = por %p89, %p90
      %p92 = scmp.ne.s32.totalorder %s80, %s81
      %p93 = scmp.eq.s32.totalorder %s17, 1
      %p94 = por %p92, %p93
      %p96 = scmp.ne.s32.totalorder %s81, %s95
      %p97 = scmp.eq.s32.totalorder %s17, 0
      %p98 = por %p96, %p97
      %s99 = ssub.s32 %s18, %s30
      %s100 = ssub.s32 %s19, %s26
      %s101 = sor.u32 %s99, %s100
      %p102 = scmp.eq.s32.totalorder %s101, 0
      %s104 = sadd.s32 %s103, 1
      %s105 = scalar_select %p102, %s103, %s104
      %p108 = pneg %p102
      %p109 = scmp.eq.s32.totalorder %s11, 1
      %p110 = por %p108, %p109
      %p111 = scmp.ne.s32.totalorder %s103, %s106
      %p112 = scmp.eq.s32.totalorder %s11, 0
      %p113 = por %p111, %p112
      %p114 = scmp.ne.s32.totalorder %s103, %s106
      %p115 = scmp.eq.s32.totalorder %s16, 1
      %p116 = por %p114, %p115
      %p117 = scmp.ne.s32.totalorder %s106, %s107
      %p118 = scmp.eq.s32.totalorder %s16, 0
      %p119 = por %p117, %p118
      %p120 = scmp.ne.s32.totalorder %s106, %s107
      %p121 = scmp.eq.s32.totalorder %s17, 1
      %p122 = por %p120, %p121
      %p124 = scmp.ne.s32.totalorder %s107, %s123
      %p125 = scmp.eq.s32.totalorder %s17, 0
      %p126 = por %p124, %p125
      %s127 = ssub.s32 %s18, %s30
      %s128 = ssub.s32 %s19, %s26
      %s129 = sor.u32 %s127, %s128
      %p130 = scmp.eq.s32.totalorder %s129, 0
      %s132 = sadd.s32 %s131, 1
      %s133 = scalar_select %p130, %s131, %s132
      %p136 = pneg %p130
      %p137 = scmp.eq.s32.totalorder %s11, 1
      %p138 = por %p136, %p137
      %p139 = scmp.ne.s32.totalorder %s131, %s134
      %p140 = scmp.eq.s32.totalorder %s11, 0
      %p141 = por %p139, %p140
      %p142 = scmp.ne.s32.totalorder %s131, %s134
      %p143 = scmp.eq.s32.totalorder %s16, 1
      %p144 = por %p142, %p143
      %p145 = scmp.ne.s32.totalorder %s134, %s135
      %p146 = scmp.eq.s32.totalorder %s16, 0
      %p147 = por %p145, %p146
      %p148 = scmp.ne.s32.totalorder %s134, %s135
      %p149 = scmp.eq.s32.totalorder %s17, 1
      %p150 = por %p148, %p149
      %p152 = scmp.ne.s32.totalorder %s135, %s151
      %p153 = scmp.eq.s32.totalorder %s17, 0
      %p154 = por %p152, %p153
      %p155 = scmp.le.s32.totalorder 1, %s11
      %p156 = scmp.lt.s32.totalorder %s11, 3
      %p157 = pnand %p155, %p156
      %p158 = pneg %p157
      // Predicated region
      $region9: #{tpu_custom_call.1} parent=5 // pred_check
        _
      $region10: #{tpu_custom_call.1} parent=5 // pred_check_branch
        %160 = sbr.rel (%p157) target = $region12
      $region11: #{tpu_custom_call.1} parent=5 // pred_region
        %s161 = ssub.s32 %s11, 1
        // Predicated region
        $region13: #{tpu_custom_call.1} parent=11 // pred_check
          %p162 = pneg %p49
        $region14: #{tpu_custom_call.1} parent=11 // pred_check_branch
          %164 = sbr.rel (%p162) target = $region16
        $region15: #{tpu_custom_call.1} parent=11 // pred_region
          %p165 = scmp.lt.s32.totalorder %s20, 0
          %s166 = scalar_select %p165, %s20, 0
          %s167 = smul.addr %s166, 2
          %s168 = smul.addr %s167, 2
          %s169 = scalar_lea.vmem %s0, %s168
        $region16: #{tpu_custom_call.1} parent=11 // pred_fallthru
          _
        // Predicated region
        $region17: #{tpu_custom_call.1} parent=11 // pred_check
          %p170 = pneg %p70
        $region18: #{tpu_custom_call.1} parent=11 // pred_check_branch
          %172 = sbr.rel (%p170) target = $region20
        $region19: #{tpu_custom_call.1} parent=11 // pred_region
          %s174 = ssub.s32 4864, 4864
          %175 = vsyncadd [#allocation3], %s174
          %s176 = sshll.u32 [#allocation2], 4
          %s177 = int_to_ptr.vmem [resolvable:$true] %s176
          %182 = dma.hbm_to_vmem [thread:$0]  %s1, 4864, %s177, [#allocation3], 256, 256, 16
        $region20: #{tpu_custom_call.1} parent=11 // pred_fallthru
          _
        // Predicated region
        $region21: #{tpu_custom_call.1} parent=11 // pred_check
          %p183 = pneg %p91
        $region22: #{tpu_custom_call.1} parent=11 // pred_check_branch
          %185 = sbr.rel (%p183) target = $region24
        $region23: #{tpu_custom_call.1} parent=11 // pred_region
          _
        $region24: #{tpu_custom_call.1} parent=11 // pred_fallthru
          _
      $region12: #{tpu_custom_call.1} parent=5 // pred_fallthru
        _
      %p186 = scmp.lt.s32.totalorder %s11, 2
      // Predicated region
      $region25: #{tpu_custom_call.1} parent=5 // pred_check
        %p187 = pneg %p186
      $region26: #{tpu_custom_call.1} parent=5 // pred_check_branch
        %189 = sbr.rel (%p187) target = $region28
      $region27: #{tpu_custom_call.1} parent=5 // pred_region
        // Predicated region
        $region29: #{tpu_custom_call.1} parent=27 // pred_check
          %p190 = pneg %p113
        $region30: #{tpu_custom_call.1} parent=27 // pred_check_branch
          %192 = sbr.rel (%p190) target = $region32
        $region31: #{tpu_custom_call.1} parent=27 // pred_region
          %s193 = sand.u32 %s103, 1
          %s194 = sand.u32 %s103, 1
          %s195 = smul.addr %s194, 16
          %s196 = scalar_lea.vmem [#allocation4], %s195
          %s197 = smul.u32 2, %s18
          %s198 = smul.addr %s197, 2
          %s199 = sadd.s32 %s19, %s198
          %s200 = smul.addr %s199, 8
          %s201 = scalar_lea.vmem %s3, %s200
          // Predicated region
          $region33: #{tpu_custom_call.1} parent=31 // pred_check
            _
          $region34: #{tpu_custom_call.1} parent=31 // pred_check_branch
            %203 = sbr.rel (0) target = $region36
          $region35: #{tpu_custom_call.1} parent=31 // pred_region
            // Predicated region
            $region37: #{tpu_custom_call.1} parent=35 // pred_check
              _
            $region38: #{tpu_custom_call.1} parent=35 // pred_check_branch
              %205 = sbr.rel (0) target = $region40
            $region39: #{tpu_custom_call.1} parent=35 // pred_region
              // Predicated region
              $region52: #{tpu_custom_call.1} parent=39 // pred_check
                _
              $region53: #{tpu_custom_call.1} parent=39 // pred_check_branch
                %222 = sbr.rel (0) target = $region55
              $region54: #{tpu_custom_call.1} parent=39 // pred_region
                loop: start=0, step=1, limit=1
                $region56: #{tpu_custom_call.1} parent=54 // loop_pre_header
                  _
                $region57: #{tpu_custom_call.1} parent=54 // loop_header
                  %s224 = sphi 0, %s228
                  %p225 = scmp.ge.s32.totalorder %s224, 1
                  %s229 = sphi %s201, %s201
                  %s230 = sphi %s196, %s196
                $region58: #{tpu_custom_call.1} parent=54 // loop_header_branch
                  %227 = sbr.rel (%p225) target = $region62
                $region59: #{tpu_custom_call.1} parent=54 // loop_body
                  %v231 = vld [vmem:[%s229] sm:$0xff]
                  %232 = vst [vmem:[%s230] sm:$0xff] %v231
                  %v233 = vld [vmem:[%s229 + $0x10] sm:$0xff]
                  %234 = vst [vmem:[%s230 + $0x8] sm:$0xff] %v233
                $region60: #{tpu_custom_call.1} parent=54 // loop_footer
                  %s228 = sadd.s32 1, %s224
                $region61: #{tpu_custom_call.1} parent=54 // loop_footer_branch
                  %223 = sbr.rel target = $region57
                $region62: #{tpu_custom_call.1} parent=54 // loop_exit
                  _
              $region55: #{tpu_custom_call.1} parent=39 // pred_fallthru
                _
              // Predicated region
              $region63: #{tpu_custom_call.1} parent=39 // pred_check
                _
              $region64: #{tpu_custom_call.1} parent=39 // pred_check_branch
                %236 = sbr.rel target = $region66
              $region65: #{tpu_custom_call.1} parent=39 // pred_region
                _
              $region66: #{tpu_custom_call.1} parent=39 // pred_fallthru
                _
            $region40: #{tpu_custom_call.1} parent=35 // pred_fallthru
              _
            // Predicated region
            $region41: #{tpu_custom_call.1} parent=35 // pred_check
              _
            $region42: #{tpu_custom_call.1} parent=35 // pred_check_branch
              %207 = sbr.rel target = $region44
            $region43: #{tpu_custom_call.1} parent=35 // pred_region
              loop: start=0, step=1, limit=1
              $region45: #{tpu_custom_call.1} parent=43 // loop_pre_header
                _
              $region46: #{tpu_custom_call.1} parent=43 // loop_header
                %s210 = sphi 0, %s214
                %p211 = scmp.ge.s32.totalorder %s210, 1
                %s215 = sphi %s201, %s201
                %s216 = sphi %s196, %s196
              $region47: #{tpu_custom_call.1} parent=43 // loop_header_branch
                %213 = sbr.rel (%p211) target = $region51
              $region48: #{tpu_custom_call.1} parent=43 // loop_body
                %v217 = vld [vmem:[%s215] sm:$0xff]
                %218 = vst [vmem:[%s216] sm:$0xff] %v217
                %v219 = vld [vmem:[%s215 + $0x10] sm:$0xff]
                %220 = vst [vmem:[%s216 + $0x8] sm:$0xff] %v219
              $region49: #{tpu_custom_call.1} parent=43 // loop_footer
                %s214 = sadd.s32 1, %s210
              $region50: #{tpu_custom_call.1} parent=43 // loop_footer_branch
                %209 = sbr.rel target = $region46
              $region51: #{tpu_custom_call.1} parent=43 // loop_exit
                _
            $region44: #{tpu_custom_call.1} parent=35 // pred_fallthru
              _
          $region36: #{tpu_custom_call.1} parent=31 // pred_fallthru
            _
          %237 = vnop
        $region32: #{tpu_custom_call.1} parent=27 // pred_fallthru
          _
      $region28: #{tpu_custom_call.1} parent=5 // pred_fallthru
        _
      %p238 = scmp.le.s32.totalorder 1, %s11
      %p239 = scmp.lt.s32.totalorder %s11, 3
      %p240 = pnand %p238, %p239
      %p241 = pneg %p240
      // Predicated region
      $region67: #{tpu_custom_call.1} parent=5 // pred_check
        _
      $region68: #{tpu_custom_call.1} parent=5 // pred_check_branch
        %243 = sbr.rel (%p240) target = $region70
      $region69: #{tpu_custom_call.1} parent=5 // pred_region
        %s244 = ssub.s32 %s11, 1
        // Predicated region
        $region71: #{tpu_custom_call.1} parent=69 // pred_check
          %p245 = pneg %p70
        $region72: #{tpu_custom_call.1} parent=69 // pred_check_branch
          %247 = sbr.rel (%p245) target = $region74
        $region73: #{tpu_custom_call.1} parent=69 // pred_region
          %248 = dma.done [#allocation3], 4864
        $region74: #{tpu_custom_call.1} parent=69 // pred_fallthru
          _
        %s249 = sand.u32 %s106, 1
        %s250 = sand.u32 %s106, 1
        %s251 = smul.addr %s250, 16
        %s252 = scalar_lea.vmem [#allocation4], %s251
        // Predicated region
        $region75: #{tpu_custom_call.1} parent=69 // pred_check
          %p253 = pneg %p119
        $region76: #{tpu_custom_call.1} parent=69 // pred_check_branch
          %255 = sbr.rel (%p253) target = $region78
        $region77: #{tpu_custom_call.1} parent=69 // pred_region
          _
        $region78: #{tpu_custom_call.1} parent=69 // pred_fallthru
          _
        %p256 = scmp.lt.s32.totalorder %s20, 0
        %s257 = scalar_select %p256, %s20, 0
        %s258 = smul.addr %s257, 2
        %s259 = smul.addr %s258, 2
        %s260 = scalar_lea.vmem %s0, %s259
        %p261 = pneg %p49
        %p262 = pneg %p46
        %p263 = pneg %p70
        %p264 = pneg %p67
        %p265 = pneg %p91
        %p266 = pneg %p88
        %s267 = sand.u32 %s106, 1
        %s268 = sand.u32 %s106, 1
        %s269 = smul.addr %s268, 16
        %s270 = scalar_lea.vmem [#allocation4], %s269
        %p271 = pneg %p119
        %p272 = pneg %p116
        %p273 = pneg %p147
        %p274 = pneg %p144
        %s275 = sand.u32 %s134, 1
        %s276 = sand.u32 %s134, 1
        %s277 = smul.addr %s276, 32
        %s278 = scalar_lea.vmem [#allocation5], %s277
        %p279 = scmp.lt.s32.totalorder %s20, 0
        %s280 = scalar_select %p279, %s20, 0
        %s281 = smul.addr %s280, 2
        %s282 = smul.addr %s281, 2
        %s283 = scalar_lea.vmem %s0, %s282
        %s284 = smul.u32 2, %s20
        %s285 = smul.u32 2, %s20
        %v286 = vld [vmem:[%s283] sm:$0xf]
        %v287 = vld [vmem:[#allocation2] sm:$0xff]
        %v288 = vld [vmem:[#allocation2 + $0x8] sm:$0xff]
        %v289 = vld [vmem:[#allocation2 + $0x10] sm:$0xff]
        %v290 = vld [vmem:[#allocation2 + $0x18] sm:$0xff]
        %v291 = vld [vmem:[#allocation2 + $0x20] sm:$0xff]
        %v292 = vld [vmem:[#allocation2 + $0x28] sm:$0xff]
        %v293 = vld [vmem:[#allocation2 + $0x30] sm:$0xff]
        %v294 = vld [vmem:[#allocation2 + $0x38] sm:$0xff]
        %v295 = vld [vmem:[#allocation2 + $0x40] sm:$0xff]
        %v296 = vld [vmem:[#allocation2 + $0x48] sm:$0xff]
        %v297 = vld [vmem:[#allocation2 + $0x50] sm:$0xff]
        %v298 = vld [vmem:[#allocation2 + $0x58] sm:$0xff]
        %v299 = vld [vmem:[#allocation2 + $0x60] sm:$0xff]
        %v300 = vld [vmem:[#allocation2 + $0x68] sm:$0xff]
        %v301 = vld [vmem:[#allocation2 + $0x70] sm:$0xff]
        %v302 = vld [vmem:[#allocation2 + $0x78] sm:$0xff]
        %v303 = vld [vmem:[#allocation2 + $0x80] sm:$0xff]
        %v304 = vld [vmem:[#allocation2 + $0x88] sm:$0xff]
        %v305 = vld [vmem:[#allocation2 + $0x90] sm:$0xff]
        %v306 = vld [vmem:[#allocation2 + $0x98] sm:$0xff]
        %v307 = vld [vmem:[#allocation2 + $0xa0] sm:$0xff]
        %v308 = vld [vmem:[#allocation2 + $0xa8] sm:$0xff]
        %v309 = vld [vmem:[#allocation2 + $0xb0] sm:$0xff]
        %v310 = vld [vmem:[#allocation2 + $0xb8] sm:$0xff]
        %v311 = vld [vmem:[#allocation2 + $0xc0] sm:$0xff]
        %v312 = vld [vmem:[#allocation2 + $0xc8] sm:$0xff]
        %v313 = vld [vmem:[#allocation2 + $0xd0] sm:$0xff]
        %v314 = vld [vmem:[#allocation2 + $0xd8] sm:$0xff]
        %v315 = vld [vmem:[#allocation2 + $0xe0] sm:$0xff]
        %v316 = vld [vmem:[#allocation2 + $0xe8] sm:$0xff]
        %v317 = vld [vmem:[#allocation2 + $0xf0] sm:$0xff]
        %v318 = vld [vmem:[#allocation2 + $0xf8] sm:$0xff]
        %v319 = vld [vmem:[#allocation2 + $0x100] sm:$0xff]
        %v320 = vld [vmem:[#allocation2 + $0x108] sm:$0xff]
        %v321 = vld [vmem:[#allocation2 + $0x110] sm:$0xff]
        %v322 = vld [vmem:[#allocation2 + $0x118] sm:$0xff]
        %v323 = vld [vmem:[#allocation2 + $0x120] sm:$0xf]
        %v324 = vld [vmem:[#allocation2 + $0x128] sm:$0xf]
        %v325 = vld [vmem:[%s2] sm:$0x3]
        %v327 = vlaneseq
        %v328 = vshrl.u32 %v327, 7
        %v329 = vsub.s32 0, %v328
        %v330 = vrot.slane %v325, %v329
        %v331 = vlaneseq
        %v332 = vshrl.u32 %v331, 7
        %v333 = vsub.s32 1, %v332
        %v334 = vrot.slane %v325, %v333
        %v339 = vunpack.c.l.s4 1983009808
        %v340 = vunpack.c.0.s8 %v339
        %v341 = vlaneseq
        %v342 = vshrl.u32 %v341, 7
        %v343 = vsub.s32 %v340, %v342
        %v344 = vrot.slane %v286, %v343
        %v345 = vcombine.high %v344, %v344
        %vm347 = vcmask 162816
        %v348 = vsel %vm347, %v345, 0
        %vm350 = vcmask 1043456
        %v352 = vsel %vm350, %v323, 0
        %v355 = vsel %vm350, %v324, 0
        %357 = vmatprep.subr.mxu0 %v288
        %358 = vmatpush1.msra.mxu0 %v287
        %359 = vmatprep.subr.mxu0 %v290
        %360 = vmatpush1.msra.mxu0 %v289
        %361 = vmatprep.subr.mxu0 %v292
        %362 = vmatpush1.msra.mxu0 %v291
        %363 = vmatprep.subr.mxu0 %v294
        %364 = vmatpush1.msra.mxu0 %v293
        %365 = vmatprep.subr.mxu0 %v296
        %366 = vmatpush1.msra.mxu0 %v295
        %367 = vmatprep.subr.mxu0 %v298
        %368 = vmatpush1.msra.mxu0 %v297
        %369 = vmatprep.subr.mxu0 %v300
        %370 = vmatpush1.msra.mxu0 %v299
        %371 = vmatprep.subr.mxu0 %v302
        %372 = vmatpush1.msra.mxu0 %v301
        %373 = vmatprep.subr.mxu0 %v304
        %374 = vmatpush1.msra.mxu0 %v303
        %375 = vmatprep.subr.mxu0 %v306
        %376 = vmatpush1.msra.mxu0 %v305
        %377 = vmatprep.subr.mxu0 %v308
        %378 = vmatpush1.msra.mxu0 %v307
        %379 = vmatprep.subr.mxu0 %v310
        %380 = vmatpush1.msra.mxu0 %v309
        %381 = vmatprep.subr.mxu0 %v312
        %382 = vmatpush1.msra.mxu0 %v311
        %383 = vmatprep.subr.mxu0 %v314
        %384 = vmatpush1.msra.mxu0 %v313
        %385 = vmatprep.subr.mxu0 %v316
        %386 = vmatpush1.msra.mxu0 %v315
        %387 = vmatprep.subr.mxu0 %v318
        %388 = vmatpush1.msra.mxu0 %v317
        %389 = vmatprep.subr.mxu0 %v320
        %390 = vmatpush1.msra.mxu0 %v319
        %391 = vmatprep.subr.mxu0 %v322
        %392 = vmatpush1.msra.mxu0 %v321
        %393 = vmatprep.subr.mxu0 %v355
        %394 = vmatpush1.msra.mxu0 %v352
        %395 = vmatprep.subr.mxu0 0.0
        %396 = vmatpush1.msra.mxu0 0.0
        %397 = vmatprep.subr.mxu0 0.0
        %398 = vmatpush1.msra.mxu0 0.0
        %399 = vmatprep.subr.mxu0 0.0
        %400 = vmatpush1.msra.mxu0 0.0
        %401 = vmatprep.subr.mxu0 0.0
        %402 = vmatpush1.msra.mxu0 0.0
        %403 = vmatprep.subr.mxu0 0.0
        %404 = vmatpush1.msra.mxu0 0.0
        %405 = vmatprep.subr.mxu0 0.0
        %406 = vmatpush1.msra.mxu0 0.0
        %407 = vmatprep.subr.mxu0 0.0
        %408 = vmatpush1.msra.mxu0 0.0
        %409 = vmatprep.subr.mxu0 0.0
        %410 = vmatpush1.msra.mxu0 0.0
        %411 = vmatprep.subr.mxu0 0.0
        %412 = vmatpush1.msra.mxu0 0.0
        %413 = vmatprep.subr.mxu0 0.0
        %414 = vmatpush1.msra.mxu0 0.0
        %415 = vmatprep.subr.mxu0 0.0
        %416 = vmatpush1.msra.mxu0 0.0
        %417 = vmatprep.subr.mxu0 0.0
        %418 = vmatpush1.msra.mxu0 0.0
        %419 = vmatprep.subr.mxu0 0.0
        %420 = vmatpush1.msra.mxu0 0.0
        %421 = vmatprep.mubr.f32.mxu0 %v348
        %422 = vmatmul.mubr.f32.gmra.mrb[0].mxu0 %v344
        %v423 = vpop.f32.mrb[0].mxu0
        %v424 = vadd.f32 %v330, %v423
        %v425 = vpop.f32.mrb[0].mxu0
        %v426 = vadd.f32 %v334, %v425
        %427 = vdwg.mxu0
        %v428 = vld [vmem:[%s252] sm:$0xff]
        %v429 = vld [vmem:[%s252 + $0x8] sm:$0xff]
        %v432 = vcombine.low %v424, %v426
        %v434 = vunpack.c.l.s4 1966171168
        %v435 = vunpack.c.0.s8 %v434
        %v436 = vlaneseq
        %v437 = vshrl.u32 %v436, 7
        %v438 = vsub.s32 %v435, %v437
        %v439 = vrot.slane %v432, %v438
        %v440 = vcombine.high %v439, %v439
        %v442 = vunpack.c.l.s4 1966171168
        %v443 = vunpack.c.0.s8 %v442
        %v444 = vlaneseq
        %v445 = vshrl.u32 %v444, 7
        %v446 = vsub.s32 %v443, %v445
        %v447 = vrot.slane %v439, %v446
        %v449 = vunpack.c.l.s4 1966171168
        %v450 = vunpack.c.0.s8 %v449
        %v451 = vlaneseq
        %v452 = vshrl.u32 %v451, 7
        %v453 = vsub.s32 %v450, %v452
        %v454 = vrot.slane %v440, %v453
        %456 = vset.pattern.permute.xlu0 0
        %457 = vperm.xlu0 %456, %v428
        %v458 = vpop.permute.xlu0 %457
        %461 = vset.pattern.permute.xlu0 0
        %462 = vperm.xlu0 %461, %v429
        %v463 = vpop.permute.xlu0 %462
        %v465 = vlaneseq
        %v466 = vshrl.u32 %v465, 7
        %v467 = vsub.s32 0, %v466
        %v468 = vrot.slane %v447, %v467
        %v469 = vlaneseq
        %v470 = vshrl.u32 %v469, 7
        %v471 = vsub.s32 1, %v470
        %v472 = vrot.slane %v447, %v471
        %v473 = vlaneseq
        %v474 = vshrl.u32 %v473, 7
        %v475 = vsub.s32 0, %v474
        %v476 = vrot.slane %v454, %v475
        %v477 = vlaneseq
        %v478 = vshrl.u32 %v477, 7
        %v479 = vsub.s32 1, %v478
        %v480 = vrot.slane %v454, %v479
        %v485 = vmul.f32 %v458, %v468
        %v486 = vmul.f32 %v458, %v472
        %v487 = vmul.f32 %v463, %v476
        %v488 = vmul.f32 %v463, %v480
        %v490 = vunpack.c.l.s4 1966171168
        %v491 = vunpack.c.0.s8 %v490
        %v492 = vlaneseq
        %v493 = vshrl.u32 %v492, 7
        %v494 = vsub.s32 %v491, %v493
        %v495 = vrot.slane %v286, %v494
        %v496 = vcombine.high %v495, %v495
        %v497 = vlaneseq
        %v498 = vshrl.u32 %v497, 7
        %v499 = vsub.s32 0, %v498
        %v500 = vrot.slane %v495, %v499
        %v501 = vlaneseq
        %v502 = vshrl.u32 %v501, 7
        %v503 = vsub.s32 1, %v502
        %v504 = vrot.slane %v495, %v503
        %v505 = vlaneseq
        %v506 = vshrl.u32 %v505, 7
        %v507 = vsub.s32 0, %v506
        %v508 = vrot.slane %v496, %v507
        %v509 = vlaneseq
        %v510 = vshrl.u32 %v509, 7
        %v511 = vsub.s32 1, %v510
        %v512 = vrot.slane %v496, %v511
        %v517 = vadd.f32 %v485, %v500
        %v518 = vadd.f32 %v486, %v504
        %v519 = vadd.f32 %v487, %v508
        %v520 = vadd.f32 %v488, %v512
        %521 = vst [vmem:[%s278] sm:$0xff] %v517
        %522 = vst.msk [vmem:[%s278 + $0x8] sm:$0xff] %vm347, %v518
        %523 = vst [vmem:[%s278 + $0x10] sm:$0xff] %v519
        %524 = vst.msk [vmem:[%s278 + $0x18] sm:$0xff] %vm347, %v520
        %s525 = sand.u32 %s134, 1
        %s526 = sand.u32 %s134, 1
        %s527 = smul.addr %s526, 32
        %s528 = scalar_lea.vmem [#allocation5], %s527
        // Predicated region
        $region79: #{tpu_custom_call.1} parent=69 // pred_check
          %p529 = pneg %p144
        $region80: #{tpu_custom_call.1} parent=69 // pred_check_branch
          %531 = sbr.rel (%p529) target = $region82
        $region81: #{tpu_custom_call.1} parent=69 // pred_region
          %s532 = smul.u32 2, %s20
          %s533 = smul.addr %s21, 2
          %s534 = smul.addr %s532, 4
          %s535 = sadd.s32 %s533, %s534
          %s536 = smul.addr %s535, 8
          %s537 = scalar_lea.vmem %s4, %s536
          // Predicated region
          $region83: #{tpu_custom_call.1} parent=81 // pred_check
            _
          $region84: #{tpu_custom_call.1} parent=81 // pred_check_branch
            %539 = sbr.rel (0) target = $region86
          $region85: #{tpu_custom_call.1} parent=81 // pred_region
            // Predicated region
            $region87: #{tpu_custom_call.1} parent=85 // pred_check
              _
            $region88: #{tpu_custom_call.1} parent=85 // pred_check_branch
              %541 = sbr.rel (0) target = $region90
            $region89: #{tpu_custom_call.1} parent=85 // pred_region
              loop: start=0, step=1, limit=1
              $region91: #{tpu_custom_call.1} parent=89 // loop_pre_header
                _
              $region92: #{tpu_custom_call.1} parent=89 // loop_header
                %s543 = sphi 0, %s547
                %p544 = scmp.ge.s32.totalorder %s543, 1
                %s548 = sphi %s528, %s528
                %s549 = sphi %s537, %s537
              $region93: #{tpu_custom_call.1} parent=89 // loop_header_branch
                %546 = sbr.rel (%p544) target = $region97
              $region94: #{tpu_custom_call.1} parent=89 // loop_body
                %v550 = vld [vmem:[%s548] sm:$0xff]
                %551 = vst [vmem:[%s549] sm:$0xff] %v550
                %v552 = vld [vmem:[%s548 + $0x8] sm:$0xff]
                %553 = vst [vmem:[%s549 + $0x8] sm:$0xff] %v552
                %v554 = vld [vmem:[%s548 + $0x10] sm:$0xff]
                %555 = vst [vmem:[%s549 + $0x20] sm:$0xff] %v554
                %v556 = vld [vmem:[%s548 + $0x18] sm:$0xff]
                %557 = vst [vmem:[%s549 + $0x28] sm:$0xff] %v556
              $region95: #{tpu_custom_call.1} parent=89 // loop_footer
                %s547 = sadd.s32 1, %s543
              $region96: #{tpu_custom_call.1} parent=89 // loop_footer_branch
                %542 = sbr.rel target = $region92
              $region97: #{tpu_custom_call.1} parent=89 // loop_exit
                _
            $region90: #{tpu_custom_call.1} parent=85 // pred_fallthru
              _
            // Predicated region
            $region98: #{tpu_custom_call.1} parent=85 // pred_check
              _
            $region99: #{tpu_custom_call.1} parent=85 // pred_check_branch
              %559 = sbr.rel target = $region101
            $region100: #{tpu_custom_call.1} parent=85 // pred_region
              _
            $region101: #{tpu_custom_call.1} parent=85 // pred_fallthru
              _
          $region86: #{tpu_custom_call.1} parent=81 // pred_fallthru
            _
          %560 = vnop
        $region82: #{tpu_custom_call.1} parent=69 // pred_fallthru
          _
      $region70: #{tpu_custom_call.1} parent=5 // pred_fallthru
        _
      %p561 = scmp.le.s32.totalorder 2, %s11
      // Predicated region
      $region102: #{tpu_custom_call.1} parent=5 // pred_check
        %p562 = pneg %p561
      $region103: #{tpu_custom_call.1} parent=5 // pred_check_branch
        %564 = sbr.rel (%p562) target = $region105
      $region104: #{tpu_custom_call.1} parent=5 // pred_region
        %s565 = ssub.s32 %s11, 2
        // Predicated region
        $region106: #{tpu_custom_call.1} parent=104 // pred_check
          %p566 = pneg %p150
        $region107: #{tpu_custom_call.1} parent=104 // pred_check_branch
          %568 = sbr.rel (%p566) target = $region109
        $region108: #{tpu_custom_call.1} parent=104 // pred_region
          %s569 = sand.u32 %s135, 1
          %s570 = sand.u32 %s135, 1
          %s571 = smul.addr %s570, 32
          %s572 = scalar_lea.vmem [#allocation5], %s571
        $region109: #{tpu_custom_call.1} parent=104 // pred_fallthru
          _
      $region105: #{tpu_custom_call.1} parent=5 // pred_fallthru
        _
    $region6: #{tpu_custom_call.1} parent=1 // loop_footer
      %s15 = sadd.s32 1, %s11
    $region7: #{tpu_custom_call.1} parent=1 // loop_footer_branch
      %10 = sbr.rel target = $region3
    $region8: #{tpu_custom_call.1} parent=1 // loop_exit
      _
    %573 = vsyncpa [#allocation3], 1
    %s574 = scalar_lea.sflag [#allocation3], 1
    %575 = vsyncpa %s574, 1

</llo_original>
